<compile_context>
chip_gen: v7x
topology: tpu7x:2x2x1
jax: 0.10.0
libtpu: 0.0.40
codegen_flags: <defaults>
</compile_context>

<pallas_src>
import functools

import jax
import jax.numpy as jnp
from jax.experimental import pallas as pl
from jax.experimental.pallas import tpu as pltpu


# --------------------------------------------------------------------------
# Single fused kernel: conv1..conv4 (+relu on 1-3) + global_mean_pool + Linear
# --------------------------------------------------------------------------
def grcn2_kernel(x_ref, adj_ref, pool_ref, wconv_ref, wlin_ref, out_ref, *, hidden):
    H = hidden
    x0 = x_ref[...]          # [N, 1]
    adj = adj_ref[...]       # [N, N]   adj[i, j] = multiplicity of edge j -> i
    pool = pool_ref[...]     # [B, N]   mean-pool matrix

    # Static slices into the packed conv blob  [6H+8, H].
    w2cat = wconv_ref[0 * H:2 * H, :]          # [2H, H] (rel rows, zero, root rows, zero)
    w3cat = wconv_ref[2 * H:4 * H, :]          # [2H, H]
    w4cat = wconv_ref[4 * H:6 * H, :]          # [2H, H]
    misc = wconv_ref[6 * H:6 * H + 8, :]       # [8, H]: b2,b3,b4,w1_rel,w1_root,b1,0,0
    b2 = misc[0:1, :]
    b3 = misc[1:2, :]
    b4 = misc[2:3, :]
    w1r = misc[3:4, :]
    w1s = misc[4:5, :]
    b1 = misc[5:6, :]

    # conv1 (Fin = 1): one [N,N]x[N,1] matvec, then VPU broadcast outer products.
    v = jnp.dot(adj, x0, preferred_element_type=jnp.float32)        # [N, 1]
    h = jnp.maximum(v * w1r + x0 * w1s + b1, 0.0)                   # [N, H] (zero tail)

    def graph_conv(h_in, wcat, b):
        agg = jnp.dot(adj, h_in, preferred_element_type=jnp.float32)   # [N, H]
        cat = jnp.concatenate([agg, h_in], axis=1)                      # [N, 2H]
        return jnp.dot(cat, wcat, preferred_element_type=jnp.float32) + b

    h = jnp.maximum(graph_conv(h, w2cat, b2), 0.0)
    h = jnp.maximum(graph_conv(h, w3cat, b3), 0.0)
    h = graph_conv(h, w4cat, b4)                                     # conv4: no relu

    # global_mean_pool + Linear(H, 4).
    # TODO(synk): F.dropout(p=0.5) is identity in eval mode; training-mode dropout
    # (pltpu.prng_seed/prng_random_bits) not implemented.
    pooled = jnp.dot(pool, h, preferred_element_type=jnp.float32)    # [B, H]
    wl = wlin_ref[0:H, :]                                            # [H, 4]
    bl = wlin_ref[H:H + 1, :]                                        # [1, 4]
    out_ref[...] = jnp.dot(pooled, wl, preferred_element_type=jnp.float32) + bl


def _vmem_limit_bytes(n, b, h):
    f32 = 4
    need = (n * n + b * n + n                 # adj, pool, x0
            + 8 * n * h                        # live activations / agg / cat
            + (6 * h + 8) * h + (h + 1) * 4    # packed weights
            + b * h + b * 4) * f32
    return int(min(64 << 20, max(16 << 20, 2 * need + (2 << 20))))


def grcn2_forward(x_nodes, adj, pool, wconv, wlin):
    H = wconv.shape[1]
    B = pool.shape[0]
    N = adj.shape[0]
    n_cls = wlin.shape[1]
    x0 = x_nodes.reshape(-1, 1).astype(jnp.float32)
    vmem = pl.BlockSpec(memory_space=pltpu.MemorySpace.VMEM)
    return pl.pallas_call(
        functools.partial(grcn2_kernel, hidden=H),
        out_shape=jax.ShapeDtypeStruct((B, n_cls), jnp.float32),
        in_specs=[vmem] * 5,
        out_specs=vmem,
        compiler_params=pltpu.CompilerParams(
            vmem_limit_bytes=_vmem_limit_bytes(N, B, H)),
    )(x0, adj, pool, wconv, wlin)


# --------------------------------------------------------------------------
# Host-side, one-time parameter packing (outside jit): 14 tensors -> 2 blobs
# --------------------------------------------------------------------------
def pack_params(params, hidden):
    H = hidden

    def pad_lanes(w):                      # pad last dim to H
        return jnp.pad(w, ((0, 0), (0, H - w.shape[1])))

    def pad_rows(w):                       # pad first dim to H with zero rows
        return jnp.pad(w, ((0, H - w.shape[0]), (0, 0)))

    # conv2 weights are (H/2, H): zero-pad rows so every W_cat is (2H, H) and the
    # layer-1 output can stay H-wide with a zero tail (exact).
    w2cat = jnp.concatenate([pad_rows(params["w2_rel"]), pad_rows(params["w2_root"])], 0)
    w3cat = jnp.concatenate([params["w3_rel"], params["w3_root"]], 0)
    w4cat = jnp.concatenate([params["w4_rel"], params["w4_root"]], 0)

    misc = jnp.concatenate([
        params["b2"], params["b3"], params["b4"],
        pad_lanes(params["w1_rel"]), pad_lanes(params["w1_root"]),
        pad_lanes(params["b1"]),
        jnp.zeros((2, H), jnp.float32),
    ], axis=0)                                                        # [8, H]

    wconv = jnp.concatenate([w2cat, w3cat, w4cat, misc], axis=0)      # [6H+8, H]
    wlin = jnp.concatenate([params["w_lin"], params["b_lin"]], axis=0)  # [H+1, 4]
    return wconv.astype(jnp.float32), wlin.astype(jnp.float32)


# --------------------------------------------------------------------------
# Host-side, one-time graph operands (no scatter: one-hot comparisons + matmul)
# --------------------------------------------------------------------------
def build_graph_operands(edge_index, batch, num_nodes, num_graphs):
    node_ids = jnp.arange(num_nodes, dtype=jnp.int32)
    oh_src = (edge_index[0][:, None] == node_ids[None, :]).astype(jnp.float32)  # [E, N]
    oh_dst = (edge_index[1][:, None] == node_ids[None, :]).astype(jnp.float32)  # [E, N]
    adj = oh_dst.T @ oh_src                       # adj[dst, src] = edge multiplicity

    graph_ids = jnp.arange(num_graphs, dtype=jnp.int32)
    mask = (batch[None, :] == graph_ids[:, None]).astype(jnp.float32)           # [B, N]
    pool = mask / jnp.maximum(mask.sum(axis=1, keepdims=True), 1.0)
    return adj, pool


# --------------------------------------------------------------------------
# Parameters (weights stored as [Fin, Fout] so h = x @ W inside the kernel)
# --------------------------------------------------------------------------
def init_params(hidden, key):
    h2 = hidden // 2
    ks = jax.random.split(key, 16)

    def g(k, shape, fan_in):
        return jax.random.normal(k, shape, jnp.float32) / jnp.sqrt(float(fan_in))

    return {
        "w1_rel": g(ks[0], (1, h2), 1), "w1_root": g(ks[1], (1, h2), 1),
        "b1": jnp.zeros((1, h2), jnp.float32),
        "w2_rel": g(ks[2], (h2, hidden), h2), "w2_root": g(ks[3], (h2, hidden), h2),
        "b2": jnp.zeros((1, hidden), jnp.float32),
        "w3_rel": g(ks[4], (hidden, hidden), hidden), "w3_root": g(ks[5], (hidden, hidden), hidden),
        "b3": jnp.zeros((1, hidden), jnp.float32),
        "w4_rel": g(ks[6], (hidden, hidden), hidden), "w4_root": g(ks[7], (hidden, hidden), hidden),
        "b4": jnp.zeros((1, hidden), jnp.float32),
        "w_lin": g(ks[8], (hidden, 4), hidden),
        "b_lin": g(ks[9], (1, 4), hidden),
    }


# --------------------------------------------------------------------------
# Pure-JAX reference (same math, no Pallas) for the correctness check
# --------------------------------------------------------------------------
def reference_forward(params, x_nodes, adj, pool):
    x = x_nodes.reshape(-1, 1).astype(jnp.float32)

    def gc(h, wr, ws, b):
        return (adj @ h) @ wr + h @ ws + b

    h = jnp.maximum(gc(x, params["w1_rel"], params["w1_root"], params["b1"]), 0.0)
    h = jnp.maximum(gc(h, params["w2_rel"], params["w2_root"], params["b2"]), 0.0)
    h = jnp.maximum(gc(h, params["w3_rel"], params["w3_root"], params["b3"]), 0.0)
    h = gc(h, params["w4_rel"], params["w4_root"], params["b4"])
    return (pool @ h) @ params["w_lin"] + params["b_lin"]


if __name__ == "__main__":
    hidden_channels = 32
    num_nodes = 16            # 2 graphs x 8 nodes
    num_graphs = 2

    # deterministic inputs
    x_nodes = jax.random.normal(jax.random.PRNGKey(0), (num_nodes,), jnp.float32)

    # deterministic edges: bidirectional ring inside each graph of 8 nodes
    src, dst = [], []
    for g0 in (0, 8):
        for i in range(8):
            a, b = g0 + i, g0 + (i + 1) % 8
            src += [a, b]
            dst += [b, a]
    edge_index = jnp.array([src, dst], dtype=jnp.int32)            # [2, 32]
    batch = jnp.array([0] * 8 + [1] * 8, dtype=jnp.int32)          # [16]

    params = init_params(hidden_channels, jax.random.PRNGKey(12345))

    # one-time host-side packing / graph operands (outside the jitted forward)
    adj, pool = build_graph_operands(edge_index, batch, num_nodes, num_graphs)
    wconv, wlin = pack_params(params, hidden_channels)
    adj, pool, wconv, wlin = jax.block_until_ready((adj, pool, wconv, wlin))

    fwd = jax.jit(grcn2_forward)
    out = jax.block_until_ready(fwd(x_nodes, adj, pool, wconv, wlin))
    assert out.shape == (num_graphs, 4)

    ref = reference_forward(params, x_nodes, adj, pool)
    assert jnp.allclose(out, ref, rtol=1e-4, atol=1e-4)

    print("KERNEL_OK")
</pallas_src>

<mosaic_0001>
module attributes {stable_mosaic.version = 11 : i64} {
  func.func @grcn2_kernel(%arg0: memref<16x1xf32, #tpu.memory_space<vmem>>, %arg1: memref<16x16xf32, #tpu.memory_space<vmem>>, %arg2: memref<2x16xf32, #tpu.memory_space<vmem>>, %arg3: memref<200x32xf32, #tpu.memory_space<vmem>>, %arg4: memref<33x4xf32, #tpu.memory_space<vmem>>, %arg5: memref<2x4xf32, #tpu.memory_space<vmem>>) attributes {dimension_semantics = [], scalar_prefetch = 0 : i64, scratch_operands = 0 : i64, tpu.core_type = #tpu.core_type<tc>} {
    %c0 = arith.constant 0 : index
    %c0_0 = arith.constant 0 : index
    %0 = vector.load %arg0[%c0, %c0_0] : memref<16x1xf32, #tpu.memory_space<vmem>>, vector<16x1xf32>
    %c0_1 = arith.constant 0 : index
    %c0_2 = arith.constant 0 : index
    %1 = vector.load %arg1[%c0_1, %c0_2] : memref<16x16xf32, #tpu.memory_space<vmem>>, vector<16x16xf32>
    %c0_3 = arith.constant 0 : index
    %c0_4 = arith.constant 0 : index
    %2 = vector.load %arg2[%c0_3, %c0_4] : memref<2x16xf32, #tpu.memory_space<vmem>>, vector<2x16xf32>
    %c0_5 = arith.constant 0 : index
    %c0_6 = arith.constant 0 : index
    %3 = vector.load %arg3[%c0_5, %c0_6] : memref<200x32xf32, #tpu.memory_space<vmem>>, vector<64x32xf32>
    %c64 = arith.constant 64 : index
    %c0_7 = arith.constant 0 : index
    %4 = vector.load %arg3[%c64, %c0_7] : memref<200x32xf32, #tpu.memory_space<vmem>>, vector<64x32xf32>
    %c128 = arith.constant 128 : index
    %c0_8 = arith.constant 0 : index
    %5 = vector.load %arg3[%c128, %c0_8] : memref<200x32xf32, #tpu.memory_space<vmem>>, vector<64x32xf32>
    %c192 = arith.constant 192 : index
    %c0_9 = arith.constant 0 : index
    %6 = vector.load %arg3[%c192, %c0_9] : memref<200x32xf32, #tpu.memory_space<vmem>>, vector<8x32xf32>
    %7 = vector.extract_strided_slice %6 {offsets = [0, 0], sizes = [1, 32], strides = [1, 1]} : vector<8x32xf32> to vector<1x32xf32>
    %8 = vector.extract_strided_slice %6 {offsets = [1, 0], sizes = [1, 32], strides = [1, 1]} : vector<8x32xf32> to vector<1x32xf32>
    %9 = vector.extract_strided_slice %6 {offsets = [2, 0], sizes = [1, 32], strides = [1, 1]} : vector<8x32xf32> to vector<1x32xf32>
    %10 = vector.extract_strided_slice %6 {offsets = [3, 0], sizes = [1, 32], strides = [1, 1]} : vector<8x32xf32> to vector<1x32xf32>
    %11 = vector.extract_strided_slice %6 {offsets = [4, 0], sizes = [1, 32], strides = [1, 1]} : vector<8x32xf32> to vector<1x32xf32>
    %12 = vector.extract_strided_slice %6 {offsets = [5, 0], sizes = [1, 32], strides = [1, 1]} : vector<8x32xf32> to vector<1x32xf32>
    %cst = arith.constant dense<0.000000e+00> : vector<16x1xf32>
    %13 = tpu.matmul %1, %0, %cst {dimension_numbers = #tpu.dot_dimension_numbers<[1], [0], [0], [1], [0, 0, 1, 1], [], []>} : vector<16x16xf32>, vector<16x1xf32>, vector<16x1xf32> -> vector<16x1xf32>
    %14 = vector.broadcast %13 : vector<16x1xf32> to vector<16x32xf32>
    %15 = vector.broadcast %10 : vector<1x32xf32> to vector<16x32xf32>
    %16 = arith.mulf %14, %15 : vector<16x32xf32>
    %17 = vector.broadcast %0 : vector<16x1xf32> to vector<16x32xf32>
    %18 = vector.broadcast %11 : vector<1x32xf32> to vector<16x32xf32>
    %19 = arith.mulf %17, %18 : vector<16x32xf32>
    %20 = arith.addf %16, %19 : vector<16x32xf32>
    %21 = vector.broadcast %12 : vector<1x32xf32> to vector<16x32xf32>
    %22 = arith.addf %20, %21 : vector<16x32xf32>
    %cst_10 = arith.constant 0.000000e+00 : f32
    %23 = vector.broadcast %cst_10 : f32 to vector<16x32xf32>
    %24 = arith.maximumf %22, %23 : vector<16x32xf32>
    %cst_11 = arith.constant dense<0.000000e+00> : vector<16x32xf32>
    %25 = tpu.matmul %1, %24, %cst_11 {dimension_numbers = #tpu.dot_dimension_numbers<[1], [0], [0], [1], [0, 0, 1, 1], [], []>} : vector<16x16xf32>, vector<16x32xf32>, vector<16x32xf32> -> vector<16x32xf32>
    %26 = tpu.concatenate %25, %24 in 1 : vector<16x32xf32>, vector<16x32xf32> -> vector<16x64xf32>
    %cst_12 = arith.constant dense<0.000000e+00> : vector<16x32xf32>
    %27 = tpu.matmul %26, %3, %cst_12 {dimension_numbers = #tpu.dot_dimension_numbers<[1], [0], [0], [1], [0, 0, 1, 1], [], []>} : vector<16x64xf32>, vector<64x32xf32>, vector<16x32xf32> -> vector<16x32xf32>
    %28 = vector.broadcast %7 : vector<1x32xf32> to vector<16x32xf32>
    %29 = arith.addf %27, %28 : vector<16x32xf32>
    %cst_13 = arith.constant 0.000000e+00 : f32
    %30 = vector.broadcast %cst_13 : f32 to vector<16x32xf32>
    %31 = arith.maximumf %29, %30 : vector<16x32xf32>
    %cst_14 = arith.constant dense<0.000000e+00> : vector<16x32xf32>
    %32 = tpu.matmul %1, %31, %cst_14 {dimension_numbers = #tpu.dot_dimension_numbers<[1], [0], [0], [1], [0, 0, 1, 1], [], []>} : vector<16x16xf32>, vector<16x32xf32>, vector<16x32xf32> -> vector<16x32xf32>
    %33 = tpu.concatenate %32, %31 in 1 : vector<16x32xf32>, vector<16x32xf32> -> vector<16x64xf32>
    %cst_15 = arith.constant dense<0.000000e+00> : vector<16x32xf32>
    %34 = tpu.matmul %33, %4, %cst_15 {dimension_numbers = #tpu.dot_dimension_numbers<[1], [0], [0], [1], [0, 0, 1, 1], [], []>} : vector<16x64xf32>, vector<64x32xf32>, vector<16x32xf32> -> vector<16x32xf32>
    %35 = vector.broadcast %8 : vector<1x32xf32> to vector<16x32xf32>
    %36 = arith.addf %34, %35 : vector<16x32xf32>
    %cst_16 = arith.constant 0.000000e+00 : f32
    %37 = vector.broadcast %cst_16 : f32 to vector<16x32xf32>
    %38 = arith.maximumf %36, %37 : vector<16x32xf32>
    %cst_17 = arith.constant dense<0.000000e+00> : vector<16x32xf32>
    %39 = tpu.matmul %1, %38, %cst_17 {dimension_numbers = #tpu.dot_dimension_numbers<[1], [0], [0], [1], [0, 0, 1, 1], [], []>} : vector<16x16xf32>, vector<16x32xf32>, vector<16x32xf32> -> vector<16x32xf32>
    %40 = tpu.concatenate %39, %38 in 1 : vector<16x32xf32>, vector<16x32xf32> -> vector<16x64xf32>
    %cst_18 = arith.constant dense<0.000000e+00> : vector<16x32xf32>
    %41 = tpu.matmul %40, %5, %cst_18 {dimension_numbers = #tpu.dot_dimension_numbers<[1], [0], [0], [1], [0, 0, 1, 1], [], []>} : vector<16x64xf32>, vector<64x32xf32>, vector<16x32xf32> -> vector<16x32xf32>
    %42 = vector.broadcast %9 : vector<1x32xf32> to vector<16x32xf32>
    %43 = arith.addf %41, %42 : vector<16x32xf32>
    %cst_19 = arith.constant dense<0.000000e+00> : vector<2x32xf32>
    %44 = tpu.matmul %2, %43, %cst_19 {dimension_numbers = #tpu.dot_dimension_numbers<[1], [0], [0], [1], [0, 0, 1, 1], [], []>} : vector<2x16xf32>, vector<16x32xf32>, vector<2x32xf32> -> vector<2x32xf32>
    %c0_20 = arith.constant 0 : index
    %c0_21 = arith.constant 0 : index
    %45 = vector.load %arg4[%c0_20, %c0_21] : memref<33x4xf32, #tpu.memory_space<vmem>>, vector<32x4xf32>
    %c32 = arith.constant 32 : index
    %c0_22 = arith.constant 0 : index
    %46 = vector.load %arg4[%c32, %c0_22] : memref<33x4xf32, #tpu.memory_space<vmem>>, vector<1x4xf32>
    %cst_23 = arith.constant dense<0.000000e+00> : vector<2x4xf32>
    %47 = tpu.matmul %44, %45, %cst_23 {dimension_numbers = #tpu.dot_dimension_numbers<[1], [0], [0], [1], [0, 0, 1, 1], [], []>} : vector<2x32xf32>, vector<32x4xf32>, vector<2x4xf32> -> vector<2x4xf32>
    %48 = vector.broadcast %46 : vector<1x4xf32> to vector<2x4xf32>
    %49 = arith.addf %47, %48 : vector<2x4xf32>
    %c0_24 = arith.constant 0 : index
    %c0_25 = arith.constant 0 : index
    %50 = vector.load %arg5[%c0_24, %c0_25] : memref<2x4xf32, #tpu.memory_space<vmem>>, vector<2x4xf32>
    tpu.vector_store %arg5[%c0_24, %c0_25], %49 {strides = array<i32>} : memref<2x4xf32, #tpu.memory_space<vmem>>, vector<2x4xf32>,
    return
  }
}

</mosaic_0001>

<llo_original>
// kernel: grcn2_forward.1
$region0: #{grcn2_forward.1}
  #allocation0 [shape = 'u32[]', space=smem, size = 0x4, offset = 0x4, fixed_abs, tag = 'smem constant byte address 0x4 - core index']
  #allocation1 [shape = 'u32[144,128]{1,0:T(1,128)}', space=vmem, size = 0x12000, scoped, tag = 'internal scratch']
  %s0 = inlined_call_operand.vmem [shape: f32[16,1], index: 0, kind: input, shape index: {}]
  %s1 = inlined_call_operand.vmem [shape: f32[16,16], index: 1, kind: input, shape index: {}]
  %s2 = inlined_call_operand.vmem [shape: f32[2,16], index: 2, kind: input, shape index: {}]
  %s3 = inlined_call_operand.vmem [shape: f32[200,32], index: 3, kind: input, shape index: {}]
  %s4 = inlined_call_operand.vmem [shape: f32[33,4], index: 4, kind: input, shape index: {}]
  %s5 = inlined_call_operand.hbm [shape: f32[2,4], index: 5, kind: output, shape index: {}]
  %s6 = sld [smem:[#allocation0]]
  $region30: #{grcn2_forward.1} parent=0
    _
  %s8 = ssub.s32 1, %s6
  %s9 = scalar_select 0, %s8, %s6
  $region1: #{grcn2_forward.1} parent=0
    #allocation2 [shape = 'u8[1024]{0}', space=vmem, size = 0x400, scoped, tag = 'output window, operand 0, single buffered']
    #allocation3 [shape = 's32[1]{0}', space=sflag, size = 0x4, scoped, tag = 'scoped memory for grcn2_forward.1']
    %10 = vsyncpa [#allocation3], 0
    // Predicated region
    $region2: #{grcn2_forward.1} parent=1 // pred_check
      _
    $region3: #{grcn2_forward.1} parent=1 // pred_check_branch
      %12 = sbr.rel (0) target = $region5
    $region4: #{grcn2_forward.1} parent=1 // pred_region
      _
    $region5: #{grcn2_forward.1} parent=1 // pred_fallthru
      _
    // Predicated region
    $region6: #{grcn2_forward.1} parent=1 // pred_check
      _
    $region7: #{grcn2_forward.1} parent=1 // pred_check_branch
      %14 = sbr.rel (0) target = $region9
    $region8: #{grcn2_forward.1} parent=1 // pred_region
      _
    $region9: #{grcn2_forward.1} parent=1 // pred_fallthru
      _
    // Predicated region
    $region10: #{grcn2_forward.1} parent=1 // pred_check
      _
    $region11: #{grcn2_forward.1} parent=1 // pred_check_branch
      %16 = sbr.rel (0) target = $region13
    $region12: #{grcn2_forward.1} parent=1 // pred_region
      _
    $region13: #{grcn2_forward.1} parent=1 // pred_fallthru
      _
    // Predicated region
    $region14: #{grcn2_forward.1} parent=1 // pred_check
      _
    $region15: #{grcn2_forward.1} parent=1 // pred_check_branch
      %18 = sbr.rel (0) target = $region17
    $region16: #{grcn2_forward.1} parent=1 // pred_region
      _
    $region17: #{grcn2_forward.1} parent=1 // pred_fallthru
      _
    // Predicated region
    $region18: #{grcn2_forward.1} parent=1 // pred_check
      _
    $region19: #{grcn2_forward.1} parent=1 // pred_check_branch
      %20 = sbr.rel (0) target = $region21
    $region20: #{grcn2_forward.1} parent=1 // pred_region
      _
    $region21: #{grcn2_forward.1} parent=1 // pred_fallthru
      _
    %v21 = vld [vmem:[%s0] sm:$0xff]
    %v22 = vld [vmem:[%s0 + $0x8] sm:$0xff]
    %v23 = vld [vmem:[%s1] sm:$0xff]
    %v24 = vld [vmem:[%s1 + $0x8] sm:$0xff]
    %v25 = vld [vmem:[%s2] sm:$0x3]
    %v26 = vld [vmem:[%s3] sm:$0xff]
    %v27 = vld [vmem:[%s3 + $0x8] sm:$0xff]
    %v28 = vld [vmem:[%s3 + $0x10] sm:$0xff]
    %v29 = vld [vmem:[%s3 + $0x18] sm:$0xff]
    %v30 = vld [vmem:[%s3 + $0x20] sm:$0xff]
    %v31 = vld [vmem:[%s3 + $0x28] sm:$0xff]
    %v32 = vld [vmem:[%s3 + $0x30] sm:$0xff]
    %v33 = vld [vmem:[%s3 + $0x38] sm:$0xff]
    %v34 = vld [vmem:[%s3 + $0x40] sm:$0xff]
    %v35 = vld [vmem:[%s3 + $0x48] sm:$0xff]
    %v36 = vld [vmem:[%s3 + $0x50] sm:$0xff]
    %v37 = vld [vmem:[%s3 + $0x58] sm:$0xff]
    %v38 = vld [vmem:[%s3 + $0x60] sm:$0xff]
    %v39 = vld [vmem:[%s3 + $0x68] sm:$0xff]
    %v40 = vld [vmem:[%s3 + $0x70] sm:$0xff]
    %v41 = vld [vmem:[%s3 + $0x78] sm:$0xff]
    %v42 = vld [vmem:[%s3 + $0x80] sm:$0xff]
    %v43 = vld [vmem:[%s3 + $0x88] sm:$0xff]
    %v44 = vld [vmem:[%s3 + $0x90] sm:$0xff]
    %v45 = vld [vmem:[%s3 + $0x98] sm:$0xff]
    %v46 = vld [vmem:[%s3 + $0xa0] sm:$0xff]
    %v47 = vld [vmem:[%s3 + $0xa8] sm:$0xff]
    %v48 = vld [vmem:[%s3 + $0xb0] sm:$0xff]
    %v49 = vld [vmem:[%s3 + $0xb8] sm:$0xff]
    %v50 = vld [vmem:[%s3 + $0xc0] sm:$0xff]
    %vm51 = vcmask 130048
    %v53 = vsel %vm51, %v23, 0
    %v56 = vsel %vm51, %v24, 0
    %58 = vmatprep.subr.mxu0 0.0
    %59 = vmatpush1.msra.mxu0 %v21
    %60 = vmatprep.subr.mxu0 0.0
    %61 = vmatpush1.msra.mxu0 %v22
    %62 = vmatprep.subr.mxu0 0.0
    %63 = vmatpush1.msra.mxu0 0.0
    %64 = vmatprep.subr.mxu0 0.0
    %65 = vmatpush1.msra.mxu0 0.0
    %66 = vmatprep.subr.mxu0 0.0
    %67 = vmatpush1.msra.mxu0 0.0
    %68 = vmatprep.subr.mxu0 0.0
    %69 = vmatpush1.msra.mxu0 0.0
    %70 = vmatprep.subr.mxu0 0.0
    %71 = vmatpush1.msra.mxu0 0.0
    %72 = vmatprep.subr.mxu0 0.0
    %73 = vmatpush1.msra.mxu0 0.0
    %74 = vmatprep.subr.mxu0 0.0
    %75 = vmatpush1.msra.mxu0 0.0
    %76 = vmatprep.subr.mxu0 0.0
    %77 = vmatpush1.msra.mxu0 0.0
    %78 = vmatprep.subr.mxu0 0.0
    %79 = vmatpush1.msra.mxu0 0.0
    %80 = vmatprep.subr.mxu0 0.0
    %81 = vmatpush1.msra.mxu0 0.0
    %82 = vmatprep.subr.mxu0 0.0
    %83 = vmatpush1.msra.mxu0 0.0
    %84 = vmatprep.subr.mxu0 0.0
    %85 = vmatpush1.msra.mxu0 0.0
    %86 = vmatprep.subr.mxu0 0.0
    %87 = vmatpush1.msra.mxu0 0.0
    %88 = vmatprep.subr.mxu0 0.0
    %89 = vmatpush1.msra.mxu0 0.0
    %90 = vmatprep.subr.mxu0 0.0
    %91 = vmatpush1.msra.mxu0 0.0
    %92 = vmatprep.subr.mxu0 0.0
    %93 = vmatpush1.msra.mxu0 0.0
    %94 = vmatprep.subr.mxu0 0.0
    %95 = vmatpush1.msra.mxu0 0.0
    %96 = vmatprep.subr.mxu0 0.0
    %97 = vmatpush1.msra.mxu0 0.0
    %98 = vmatprep.subr.mxu0 0.0
    %99 = vmatpush1.msra.mxu0 0.0
    %100 = vmatprep.subr.mxu0 0.0
    %101 = vmatpush1.msra.mxu0 0.0
    %102 = vmatprep.subr.mxu0 0.0
    %103 = vmatpush1.msra.mxu0 0.0
    %104 = vmatprep.subr.mxu0 0.0
    %105 = vmatpush1.msra.mxu0 0.0
    %106 = vmatprep.subr.mxu0 0.0
    %107 = vmatpush1.msra.mxu0 0.0
    %108 = vmatprep.subr.mxu0 0.0
    %109 = vmatpush1.msra.mxu0 0.0
    %110 = vmatprep.subr.mxu0 0.0
    %111 = vmatpush1.msra.mxu0 0.0
    %112 = vmatprep.subr.mxu0 0.0
    %113 = vmatpush1.msra.mxu0 0.0
    %114 = vmatprep.subr.mxu0 0.0
    %115 = vmatpush1.msra.mxu0 0.0
    %116 = vmatprep.subr.mxu0 0.0
    %117 = vmatpush1.msra.mxu0 0.0
    %118 = vmatprep.subr.mxu0 0.0
    %119 = vmatpush1.msra.mxu0 0.0
    %120 = vmatprep.subr.mxu0 0.0
    %121 = vmatpush1.msra.mxu0 0.0
    %122 = vmatprep.mubr.f32.mxu0 0.0
    %123 = vmatmul.mubr.f32.gmra.mrb[0].mxu0 %v53
    %v124 = vpop.f32.mrb[0].mxu0
    %v125 = vadd.f32 0.0, %v124
    %v126 = vpop.f32.mrb[0].mxu0
    %127 = vmatprep.mubr.f32.mxu0 0.0
    %128 = vmatmul.mubr.f32.gmra.mrb[0].mxu0 %v56
    %v129 = vpop.f32.mrb[0].mxu0
    %v130 = vadd.f32 0.0, %v129
    %v131 = vpop.f32.mrb[0].mxu0
    %132 = vdwg.mxu0
    %134 = vset.pattern.permute.xlu0 0
    %135 = vperm.xlu0 %134, %v125
    %v136 = vpop.permute.xlu0 %135
    %139 = vset.pattern.permute.xlu0 0
    %140 = vperm.xlu0 %139, %v130
    %v141 = vpop.permute.xlu0 %140
    %v143 = vlaneseq
    %v144 = vshrl.u32 %v143, 7
    %v145 = vsub.s32 3, %v144
    %v146 = vrot.slane %v50, %v145
    %v147 = vmul.f32 %v136, %v146
    %v148 = vmul.f32 %v141, %v146
    %150 = vset.pattern.permute.xlu0 0
    %151 = vperm.xlu0 %150, %v21
    %v152 = vpop.permute.xlu0 %151
    %155 = vset.pattern.permute.xlu0 0
    %156 = vperm.xlu0 %155, %v22
    %v157 = vpop.permute.xlu0 %156
    %v159 = vlaneseq
    %v160 = vshrl.u32 %v159, 7
    %v161 = vsub.s32 4, %v160
    %v162 = vrot.slane %v50, %v161
    %v163 = vmul.f32 %v152, %v162
    %v164 = vmul.f32 %v157, %v162
    %v165 = vadd.f32 %v147, %v163
    %v166 = vadd.f32 %v148, %v164
    %v167 = vlaneseq
    %v168 = vshrl.u32 %v167, 7
    %v169 = vsub.s32 5, %v168
    %v170 = vrot.slane %v50, %v169
    %v171 = vadd.f32 %v165, %v170
    %v172 = vadd.f32 %v166, %v170
    %v173 = vmax.f32 %v171, 0.0
    %v174 = vmax.f32 %v172, 0.0
    %175 = vmatprep.subr.mxu0 0.0
    %176 = vmatpush1.msra.mxu0 %v173
    %177 = vmatprep.subr.mxu0 0.0
    %178 = vmatpush1.msra.mxu0 %v174
    %179 = vmatprep.subr.mxu0 0.0
    %180 = vmatpush1.msra.mxu0 0.0
    %181 = vmatprep.subr.mxu0 0.0
    %182 = vmatpush1.msra.mxu0 0.0
    %183 = vmatprep.subr.mxu0 0.0
    %184 = vmatpush1.msra.mxu0 0.0
    %185 = vmatprep.subr.mxu0 0.0
    %186 = vmatpush1.msra.mxu0 0.0
    %187 = vmatprep.subr.mxu0 0.0
    %188 = vmatpush1.msra.mxu0 0.0
    %189 = vmatprep.subr.mxu0 0.0
    %190 = vmatpush1.msra.mxu0 0.0
    %191 = vmatprep.subr.mxu0 0.0
    %192 = vmatpush1.msra.mxu0 0.0
    %193 = vmatprep.subr.mxu0 0.0
    %194 = vmatpush1.msra.mxu0 0.0
    %195 = vmatprep.subr.mxu0 0.0
    %196 = vmatpush1.msra.mxu0 0.0
    %197 = vmatprep.subr.mxu0 0.0
    %198 = vmatpush1.msra.mxu0 0.0
    %199 = vmatprep.subr.mxu0 0.0
    %200 = vmatpush1.msra.mxu0 0.0
    %201 = vmatprep.subr.mxu0 0.0
    %202 = vmatpush1.msra.mxu0 0.0
    %203 = vmatprep.subr.mxu0 0.0
    %204 = vmatpush1.msra.mxu0 0.0
    %205 = vmatprep.subr.mxu0 0.0
    %206 = vmatpush1.msra.mxu0 0.0
    %207 = vmatprep.subr.mxu0 0.0
    %208 = vmatpush1.msra.mxu0 0.0
    %209 = vmatprep.subr.mxu0 0.0
    %210 = vmatpush1.msra.mxu0 0.0
    %211 = vmatprep.subr.mxu0 0.0
    %212 = vmatpush1.msra.mxu0 0.0
    %213 = vmatprep.subr.mxu0 0.0
    %214 = vmatpush1.msra.mxu0 0.0
    %215 = vmatprep.subr.mxu0 0.0
    %216 = vmatpush1.msra.mxu0 0.0
    %217 = vmatprep.subr.mxu0 0.0
    %218 = vmatpush1.msra.mxu0 0.0
    %219 = vmatprep.subr.mxu0 0.0
    %220 = vmatpush1.msra.mxu0 0.0
    %221 = vmatprep.subr.mxu0 0.0
    %222 = vmatpush1.msra.mxu0 0.0
    %223 = vmatprep.subr.mxu0 0.0
    %224 = vmatpush1.msra.mxu0 0.0
    %225 = vmatprep.subr.mxu0 0.0
    %226 = vmatpush1.msra.mxu0 0.0
    %227 = vmatprep.subr.mxu0 0.0
    %228 = vmatpush1.msra.mxu0 0.0
    %229 = vmatprep.subr.mxu0 0.0
    %230 = vmatpush1.msra.mxu0 0.0
    %231 = vmatprep.subr.mxu0 0.0
    %232 = vmatpush1.msra.mxu0 0.0
    %233 = vmatprep.subr.mxu0 0.0
    %234 = vmatpush1.msra.mxu0 0.0
    %235 = vmatprep.subr.mxu0 0.0
    %236 = vmatpush1.msra.mxu0 0.0
    %237 = vmatprep.subr.mxu0 0.0
    %238 = vmatpush1.msra.mxu0 0.0
    %239 = vmatprep.mubr.f32.mxu0 0.0
    %240 = vmatmul.mubr.f32.gmra.mrb[0].mxu0 %v53
    %v241 = vpop.f32.mrb[0].mxu0
    %v242 = vadd.f32 0.0, %v241
    %v243 = vpop.f32.mrb[0].mxu0
    %244 = vmatprep.mubr.f32.mxu0 0.0
    %245 = vmatmul.mubr.f32.gmra.mrb[0].mxu0 %v56
    %v246 = vpop.f32.mrb[0].mxu0
    %v247 = vadd.f32 0.0, %v246
    %v248 = vpop.f32.mrb[0].mxu0
    %249 = vdwg.mxu0
    %252 = vrot.lane.b32.xlu0 %v173, 32
    %v253 = vpop.permute.xlu0 %252
    %254 = vrot.lane.b32.xlu0 %v174, 32
    %v255 = vpop.permute.xlu0 %254
    %vm258 = vcmask 261120
    %v259 = vsel %vm258, %v242, %v253
    %v260 = vsel %vm258, %v247, %v255
    %v261 = vlaneseq
    %v262 = vshrl.u32 %v261, 7
    %v263 = vsub.s32 0, %v262
    %v264 = vrot.slane %v50, %v263
    %vm265 = vcmask 523264
    %v267 = vsel %vm265, %v259, 0
    %v270 = vsel %vm265, %v260, 0
    %272 = vmatprep.subr.mxu0 0.0
    %273 = vmatpush1.msra.mxu0 %v26
    %274 = vmatprep.subr.mxu0 0.0
    %275 = vmatpush1.msra.mxu0 %v27
    %276 = vmatprep.subr.mxu0 0.0
    %277 = vmatpush1.msra.mxu0 %v28
    %278 = vmatprep.subr.mxu0 0.0
    %279 = vmatpush1.msra.mxu0 %v29
    %280 = vmatprep.subr.mxu0 0.0
    %281 = vmatpush1.msra.mxu0 %v30
    %282 = vmatprep.subr.mxu0 0.0
    %283 = vmatpush1.msra.mxu0 %v31
    %284 = vmatprep.subr.mxu0 0.0
    %285 = vmatpush1.msra.mxu0 %v32
    %286 = vmatprep.subr.mxu0 0.0
    %287 = vmatpush1.msra.mxu0 %v33
    %288 = vmatprep.subr.mxu0 0.0
    %289 = vmatpush1.msra.mxu0 0.0
    %290 = vmatprep.subr.mxu0 0.0
    %291 = vmatpush1.msra.mxu0 0.0
    %292 = vmatprep.subr.mxu0 0.0
    %293 = vmatpush1.msra.mxu0 0.0
    %294 = vmatprep.subr.mxu0 0.0
    %295 = vmatpush1.msra.mxu0 0.0
    %296 = vmatprep.subr.mxu0 0.0
    %297 = vmatpush1.msra.mxu0 0.0
    %298 = vmatprep.subr.mxu0 0.0
    %299 = vmatpush1.msra.mxu0 0.0
    %300 = vmatprep.subr.mxu0 0.0
    %301 = vmatpush1.msra.mxu0 0.0
    %302 = vmatprep.subr.mxu0 0.0
    %303 = vmatpush1.msra.mxu0 0.0
    %304 = vmatprep.subr.mxu0 0.0
    %305 = vmatpush1.msra.mxu0 0.0
    %306 = vmatprep.subr.mxu0 0.0
    %307 = vmatpush1.msra.mxu0 0.0
    %308 = vmatprep.subr.mxu0 0.0
    %309 = vmatpush1.msra.mxu0 0.0
    %310 = vmatprep.subr.mxu0 0.0
    %311 = vmatpush1.msra.mxu0 0.0
    %312 = vmatprep.subr.mxu0 0.0
    %313 = vmatpush1.msra.mxu0 0.0
    %314 = vmatprep.subr.mxu0 0.0
    %315 = vmatpush1.msra.mxu0 0.0
    %316 = vmatprep.subr.mxu0 0.0
    %317 = vmatpush1.msra.mxu0 0.0
    %318 = vmatprep.subr.mxu0 0.0
    %319 = vmatpush1.msra.mxu0 0.0
    %320 = vmatprep.subr.mxu0 0.0
    %321 = vmatpush1.msra.mxu0 0.0
    %322 = vmatprep.subr.mxu0 0.0
    %323 = vmatpush1.msra.mxu0 0.0
    %324 = vmatprep.subr.mxu0 0.0
    %325 = vmatpush1.msra.mxu0 0.0
    %326 = vmatprep.subr.mxu0 0.0
    %327 = vmatpush1.msra.mxu0 0.0
    %328 = vmatprep.subr.mxu0 0.0
    %329 = vmatpush1.msra.mxu0 0.0
    %330 = vmatprep.subr.mxu0 0.0
    %331 = vmatpush1.msra.mxu0 0.0
    %332 = vmatprep.subr.mxu0 0.0
    %333 = vmatpush1.msra.mxu0 0.0
    %334 = vmatprep.subr.mxu0 0.0
    %335 = vmatpush1.msra.mxu0 0.0
    %336 = vmatprep.mubr.f32.mxu0 0.0
    %337 = vmatmul.mubr.f32.gmra.mrb[0].mxu0 %v267
    %v338 = vpop.f32.mrb[0].mxu0
    %v339 = vadd.f32 %v264, %v338
    %v340 = vpop.f32.mrb[0].mxu0
    %341 = vmatprep.mubr.f32.mxu0 0.0
    %342 = vmatmul.mubr.f32.gmra.mrb[0].mxu0 %v270
    %v343 = vpop.f32.mrb[0].mxu0
    %v344 = vadd.f32 %v264, %v343
    %v345 = vpop.f32.mrb[0].mxu0
    %346 = vdwg.mxu0
    %v347 = vmax.f32 %v339, 0.0
    %v348 = vmax.f32 %v344, 0.0
    %349 = vmatprep.subr.mxu0 0.0
    %350 = vmatpush1.msra.mxu0 %v347
    %351 = vmatprep.subr.mxu0 0.0
    %352 = vmatpush1.msra.mxu0 %v348
    %353 = vmatprep.subr.mxu0 0.0
    %354 = vmatpush1.msra.mxu0 0.0
    %355 = vmatprep.subr.mxu0 0.0
    %356 = vmatpush1.msra.mxu0 0.0
    %357 = vmatprep.subr.mxu0 0.0
    %358 = vmatpush1.msra.mxu0 0.0
    %359 = vmatprep.subr.mxu0 0.0
    %360 = vmatpush1.msra.mxu0 0.0
    %361 = vmatprep.subr.mxu0 0.0
    %362 = vmatpush1.msra.mxu0 0.0
    %363 = vmatprep.subr.mxu0 0.0
    %364 = vmatpush1.msra.mxu0 0.0
    %365 = vmatprep.subr.mxu0 0.0
    %366 = vmatpush1.msra.mxu0 0.0
    %367 = vmatprep.subr.mxu0 0.0
    %368 = vmatpush1.msra.mxu0 0.0
    %369 = vmatprep.subr.mxu0 0.0
    %370 = vmatpush1.msra.mxu0 0.0
    %371 = vmatprep.subr.mxu0 0.0
    %372 = vmatpush1.msra.mxu0 0.0
    %373 = vmatprep.subr.mxu0 0.0
    %374 = vmatpush1.msra.mxu0 0.0
    %375 = vmatprep.subr.mxu0 0.0
    %376 = vmatpush1.msra.mxu0 0.0
    %377 = vmatprep.subr.mxu0 0.0
    %378 = vmatpush1.msra.mxu0 0.0
    %379 = vmatprep.subr.mxu0 0.0
    %380 = vmatpush1.msra.mxu0 0.0
    %381 = vmatprep.subr.mxu0 0.0
    %382 = vmatpush1.msra.mxu0 0.0
    %383 = vmatprep.subr.mxu0 0.0
    %384 = vmatpush1.msra.mxu0 0.0
    %385 = vmatprep.subr.mxu0 0.0
    %386 = vmatpush1.msra.mxu0 0.0
    %387 = vmatprep.subr.mxu0 0.0
    %388 = vmatpush1.msra.mxu0 0.0
    %389 = vmatprep.subr.mxu0 0.0
    %390 = vmatpush1.msra.mxu0 0.0
    %391 = vmatprep.subr.mxu0 0.0
    %392 = vmatpush1.msra.mxu0 0.0
    %393 = vmatprep.subr.mxu0 0.0
    %394 = vmatpush1.msra.mxu0 0.0
    %395 = vmatprep.subr.mxu0 0.0
    %396 = vmatpush1.msra.mxu0 0.0
    %397 = vmatprep.subr.mxu0 0.0
    %398 = vmatpush1.msra.mxu0 0.0
    %399 = vmatprep.subr.mxu0 0.0
    %400 = vmatpush1.msra.mxu0 0.0
    %401 = vmatprep.subr.mxu0 0.0
    %402 = vmatpush1.msra.mxu0 0.0
    %403 = vmatprep.subr.mxu0 0.0
    %404 = vmatpush1.msra.mxu0 0.0
    %405 = vmatprep.subr.mxu0 0.0
    %406 = vmatpush1.msra.mxu0 0.0
    %407 = vmatprep.subr.mxu0 0.0
    %408 = vmatpush1.msra.mxu0 0.0
    %409 = vmatprep.subr.mxu0 0.0
    %410 = vmatpush1.msra.mxu0 0.0
    %411 = vmatprep.subr.mxu0 0.0
    %412 = vmatpush1.msra.mxu0 0.0
    %413 = vmatprep.mubr.f32.mxu0 0.0
    %414 = vmatmul.mubr.f32.gmra.mrb[0].mxu0 %v53
    %v415 = vpop.f32.mrb[0].mxu0
    %v416 = vadd.f32 0.0, %v415
    %v417 = vpop.f32.mrb[0].mxu0
    %418 = vmatprep.mubr.f32.mxu0 0.0
    %419 = vmatmul.mubr.f32.gmra.mrb[0].mxu0 %v56
    %v420 = vpop.f32.mrb[0].mxu0
    %v421 = vadd.f32 0.0, %v420
    %v422 = vpop.f32.mrb[0].mxu0
    %423 = vdwg.mxu0
    %426 = vrot.lane.b32.xlu0 %v347, 32
    %v427 = vpop.permute.xlu0 %426
    %428 = vrot.lane.b32.xlu0 %v348, 32
    %v429 = vpop.permute.xlu0 %428
    %v432 = vsel %vm258, %v416, %v427
    %v433 = vsel %vm258, %v421, %v429
    %v434 = vlaneseq
    %v435 = vshrl.u32 %v434, 7
    %v436 = vsub.s32 1, %v435
    %v437 = vrot.slane %v50, %v436
    %v439 = vsel %vm265, %v432, 0
    %v442 = vsel %vm265, %v433, 0
    %444 = vmatprep.subr.mxu0 0.0
    %445 = vmatpush1.msra.mxu0 %v34
    %446 = vmatprep.subr.mxu0 0.0
    %447 = vmatpush1.msra.mxu0 %v35
    %448 = vmatprep.subr.mxu0 0.0
    %449 = vmatpush1.msra.mxu0 %v36
    %450 = vmatprep.subr.mxu0 0.0
    %451 = vmatpush1.msra.mxu0 %v37
    %452 = vmatprep.subr.mxu0 0.0
    %453 = vmatpush1.msra.mxu0 %v38
    %454 = vmatprep.subr.mxu0 0.0
    %455 = vmatpush1.msra.mxu0 %v39
    %456 = vmatprep.subr.mxu0 0.0
    %457 = vmatpush1.msra.mxu0 %v40
    %458 = vmatprep.subr.mxu0 0.0
    %459 = vmatpush1.msra.mxu0 %v41
    %460 = vmatprep.subr.mxu0 0.0
    %461 = vmatpush1.msra.mxu0 0.0
    %462 = vmatprep.subr.mxu0 0.0
    %463 = vmatpush1.msra.mxu0 0.0
    %464 = vmatprep.subr.mxu0 0.0
    %465 = vmatpush1.msra.mxu0 0.0
    %466 = vmatprep.subr.mxu0 0.0
    %467 = vmatpush1.msra.mxu0 0.0
    %468 = vmatprep.subr.mxu0 0.0
    %469 = vmatpush1.msra.mxu0 0.0
    %470 = vmatprep.subr.mxu0 0.0
    %471 = vmatpush1.msra.mxu0 0.0
    %472 = vmatprep.subr.mxu0 0.0
    %473 = vmatpush1.msra.mxu0 0.0
    %474 = vmatprep.subr.mxu0 0.0
    %475 = vmatpush1.msra.mxu0 0.0
    %476 = vmatprep.subr.mxu0 0.0
    %477 = vmatpush1.msra.mxu0 0.0
    %478 = vmatprep.subr.mxu0 0.0
    %479 = vmatpush1.msra.mxu0 0.0
    %480 = vmatprep.subr.mxu0 0.0
    %481 = vmatpush1.msra.mxu0 0.0
    %482 = vmatprep.subr.mxu0 0.0
    %483 = vmatpush1.msra.mxu0 0.0
    %484 = vmatprep.subr.mxu0 0.0
    %485 = vmatpush1.msra.mxu0 0.0
    %486 = vmatprep.subr.mxu0 0.0
    %487 = vmatpush1.msra.mxu0 0.0
    %488 = vmatprep.subr.mxu0 0.0
    %489 = vmatpush1.msra.mxu0 0.0
    %490 = vmatprep.subr.mxu0 0.0
    %491 = vmatpush1.msra.mxu0 0.0
    %492 = vmatprep.subr.mxu0 0.0
    %493 = vmatpush1.msra.mxu0 0.0
    %494 = vmatprep.subr.mxu0 0.0
    %495 = vmatpush1.msra.mxu0 0.0
    %496 = vmatprep.subr.mxu0 0.0
    %497 = vmatpush1.msra.mxu0 0.0
    %498 = vmatprep.subr.mxu0 0.0
    %499 = vmatpush1.msra.mxu0 0.0
    %500 = vmatprep.subr.mxu0 0.0
    %501 = vmatpush1.msra.mxu0 0.0
    %502 = vmatprep.subr.mxu0 0.0
    %503 = vmatpush1.msra.mxu0 0.0
    %504 = vmatprep.subr.mxu0 0.0
    %505 = vmatpush1.msra.mxu0 0.0
    %506 = vmatprep.subr.mxu0 0.0
    %507 = vmatpush1.msra.mxu0 0.0
    %508 = vmatprep.mubr.f32.mxu0 0.0
    %509 = vmatmul.mubr.f32.gmra.mrb[0].mxu0 %v439
    %v510 = vpop.f32.mrb[0].mxu0
    %v511 = vadd.f32 %v437, %v510
    %v512 = vpop.f32.mrb[0].mxu0
    %513 = vmatprep.mubr.f32.mxu0 0.0
    %514 = vmatmul.mubr.f32.gmra.mrb[0].mxu0 %v442
    %v515 = vpop.f32.mrb[0].mxu0
    %v516 = vadd.f32 %v437, %v515
    %v517 = vpop.f32.mrb[0].mxu0
    %518 = vdwg.mxu0
    %v519 = vmax.f32 %v511, 0.0
    %v520 = vmax.f32 %v516, 0.0
    %521 = vmatprep.subr.mxu0 0.0
    %522 = vmatpush1.msra.mxu0 %v519
    %523 = vmatprep.subr.mxu0 0.0
    %524 = vmatpush1.msra.mxu0 %v520
    %525 = vmatprep.subr.mxu0 0.0
    %526 = vmatpush1.msra.mxu0 0.0
    %527 = vmatprep.subr.mxu0 0.0
    %528 = vmatpush1.msra.mxu0 0.0
    %529 = vmatprep.subr.mxu0 0.0
    %530 = vmatpush1.msra.mxu0 0.0
    %531 = vmatprep.subr.mxu0 0.0
    %532 = vmatpush1.msra.mxu0 0.0
    %533 = vmatprep.subr.mxu0 0.0
    %534 = vmatpush1.msra.mxu0 0.0
    %535 = vmatprep.subr.mxu0 0.0
    %536 = vmatpush1.msra.mxu0 0.0
    %537 = vmatprep.subr.mxu0 0.0
    %538 = vmatpush1.msra.mxu0 0.0
    %539 = vmatprep.subr.mxu0 0.0
    %540 = vmatpush1.msra.mxu0 0.0
    %541 = vmatprep.subr.mxu0 0.0
    %542 = vmatpush1.msra.mxu0 0.0
    %543 = vmatprep.subr.mxu0 0.0
    %544 = vmatpush1.msra.mxu0 0.0
    %545 = vmatprep.subr.mxu0 0.0
    %546 = vmatpush1.msra.mxu0 0.0
    %547 = vmatprep.subr.mxu0 0.0
    %548 = vmatpush1.msra.mxu0 0.0
    %549 = vmatprep.subr.mxu0 0.0
    %550 = vmatpush1.msra.mxu0 0.0
    %551 = vmatprep.subr.mxu0 0.0
    %552 = vmatpush1.msra.mxu0 0.0
    %553 = vmatprep.subr.mxu0 0.0
    %554 = vmatpush1.msra.mxu0 0.0
    %555 = vmatprep.subr.mxu0 0.0
    %556 = vmatpush1.msra.mxu0 0.0
    %557 = vmatprep.subr.mxu0 0.0
    %558 = vmatpush1.msra.mxu0 0.0
    %559 = vmatprep.subr.mxu0 0.0
    %560 = vmatpush1.msra.mxu0 0.0
    %561 = vmatprep.subr.mxu0 0.0
    %562 = vmatpush1.msra.mxu0 0.0
    %563 = vmatprep.subr.mxu0 0.0
    %564 = vmatpush1.msra.mxu0 0.0
    %565 = vmatprep.subr.mxu0 0.0
    %566 = vmatpush1.msra.mxu0 0.0
    %567 = vmatprep.subr.mxu0 0.0
    %568 = vmatpush1.msra.mxu0 0.0
    %569 = vmatprep.subr.mxu0 0.0
    %570 = vmatpush1.msra.mxu0 0.0
    %571 = vmatprep.subr.mxu0 0.0
    %572 = vmatpush1.msra.mxu0 0.0
    %573 = vmatprep.subr.mxu0 0.0
    %574 = vmatpush1.msra.mxu0 0.0
    %575 = vmatprep.subr.mxu0 0.0
    %576 = vmatpush1.msra.mxu0 0.0
    %577 = vmatprep.subr.mxu0 0.0
    %578 = vmatpush1.msra.mxu0 0.0
    %579 = vmatprep.subr.mxu0 0.0
    %580 = vmatpush1.msra.mxu0 0.0
    %581 = vmatprep.subr.mxu0 0.0
    %582 = vmatpush1.msra.mxu0 0.0
    %583 = vmatprep.subr.mxu0 0.0
    %584 = vmatpush1.msra.mxu0 0.0
    %585 = vmatprep.mubr.f32.mxu0 0.0
    %586 = vmatmul.mubr.f32.gmra.mrb[0].mxu0 %v53
    %v587 = vpop.f32.mrb[0].mxu0
    %v588 = vadd.f32 0.0, %v587
    %v589 = vpop.f32.mrb[0].mxu0
    %590 = vmatprep.mubr.f32.mxu0 0.0
    %591 = vmatmul.mubr.f32.gmra.mrb[0].mxu0 %v56
    %v592 = vpop.f32.mrb[0].mxu0
    %v593 = vadd.f32 0.0, %v592
    %v594 = vpop.f32.mrb[0].mxu0
    %595 = vdwg.mxu0
    %598 = vrot.lane.b32.xlu0 %v519, 32
    %v599 = vpop.permute.xlu0 %598
    %600 = vrot.lane.b32.xlu0 %v520, 32
    %v601 = vpop.permute.xlu0 %600
    %v604 = vsel %vm258, %v588, %v599
    %v605 = vsel %vm258, %v593, %v601
    %v606 = vlaneseq
    %v607 = vshrl.u32 %v606, 7
    %v608 = vsub.s32 2, %v607
    %v609 = vrot.slane %v50, %v608
    %v611 = vsel %vm265, %v604, 0
    %v614 = vsel %vm265, %v605, 0
    %616 = vmatprep.subr.mxu0 0.0
    %617 = vmatpush1.msra.mxu0 %v42
    %618 = vmatprep.subr.mxu0 0.0
    %619 = vmatpush1.msra.mxu0 %v43
    %620 = vmatprep.subr.mxu0 0.0
    %621 = vmatpush1.msra.mxu0 %v44
    %622 = vmatprep.subr.mxu0 0.0
    %623 = vmatpush1.msra.mxu0 %v45
    %624 = vmatprep.subr.mxu0 0.0
    %625 = vmatpush1.msra.mxu0 %v46
    %626 = vmatprep.subr.mxu0 0.0
    %627 = vmatpush1.msra.mxu0 %v47
    %628 = vmatprep.subr.mxu0 0.0
    %629 = vmatpush1.msra.mxu0 %v48
    %630 = vmatprep.subr.mxu0 0.0
    %631 = vmatpush1.msra.mxu0 %v49
    %632 = vmatprep.subr.mxu0 0.0
    %633 = vmatpush1.msra.mxu0 0.0
    %634 = vmatprep.subr.mxu0 0.0
    %635 = vmatpush1.msra.mxu0 0.0
    %636 = vmatprep.subr.mxu0 0.0
    %637 = vmatpush1.msra.mxu0 0.0
    %638 = vmatprep.subr.mxu0 0.0
    %639 = vmatpush1.msra.mxu0 0.0
    %640 = vmatprep.subr.mxu0 0.0
    %641 = vmatpush1.msra.mxu0 0.0
    %642 = vmatprep.subr.mxu0 0.0
    %643 = vmatpush1.msra.mxu0 0.0
    %644 = vmatprep.subr.mxu0 0.0
    %645 = vmatpush1.msra.mxu0 0.0
    %646 = vmatprep.subr.mxu0 0.0
    %647 = vmatpush1.msra.mxu0 0.0
    %648 = vmatprep.subr.mxu0 0.0
    %649 = vmatpush1.msra.mxu0 0.0
    %650 = vmatprep.subr.mxu0 0.0
    %651 = vmatpush1.msra.mxu0 0.0
    %652 = vmatprep.subr.mxu0 0.0
    %653 = vmatpush1.msra.mxu0 0.0
    %654 = vmatprep.subr.mxu0 0.0
    %655 = vmatpush1.msra.mxu0 0.0
    %656 = vmatprep.subr.mxu0 0.0
    %657 = vmatpush1.msra.mxu0 0.0
    %658 = vmatprep.subr.mxu0 0.0
    %659 = vmatpush1.msra.mxu0 0.0
    %660 = vmatprep.subr.mxu0 0.0
    %661 = vmatpush1.msra.mxu0 0.0
    %662 = vmatprep.subr.mxu0 0.0
    %663 = vmatpush1.msra.mxu0 0.0
    %664 = vmatprep.subr.mxu0 0.0
    %665 = vmatpush1.msra.mxu0 0.0
    %666 = vmatprep.subr.mxu0 0.0
    %667 = vmatpush1.msra.mxu0 0.0
    %668 = vmatprep.subr.mxu0 0.0
    %669 = vmatpush1.msra.mxu0 0.0
    %670 = vmatprep.subr.mxu0 0.0
    %671 = vmatpush1.msra.mxu0 0.0
    %672 = vmatprep.subr.mxu0 0.0
    %673 = vmatpush1.msra.mxu0 0.0
    %674 = vmatprep.subr.mxu0 0.0
    %675 = vmatpush1.msra.mxu0 0.0
    %676 = vmatprep.subr.mxu0 0.0
    %677 = vmatpush1.msra.mxu0 0.0
    %678 = vmatprep.subr.mxu0 0.0
    %679 = vmatpush1.msra.mxu0 0.0
    %680 = vmatprep.mubr.f32.mxu0 0.0
    %681 = vmatmul.mubr.f32.gmra.mrb[0].mxu0 %v611
    %v682 = vpop.f32.mrb[0].mxu0
    %v683 = vadd.f32 %v609, %v682
    %v684 = vpop.f32.mrb[0].mxu0
    %685 = vmatprep.mubr.f32.mxu0 0.0
    %686 = vmatmul.mubr.f32.gmra.mrb[0].mxu0 %v614
    %v687 = vpop.f32.mrb[0].mxu0
    %v688 = vadd.f32 %v609, %v687
    %v689 = vpop.f32.mrb[0].mxu0
    %690 = vdwg.mxu0
    %v692 = vsel %vm51, %v25, 0
    %694 = vmatprep.subr.mxu0 0.0
    %695 = vmatpush1.msra.mxu0 %v683
    %696 = vmatprep.subr.mxu0 0.0
    %697 = vmatpush1.msra.mxu0 %v688
    %698 = vmatprep.subr.mxu0 0.0
    %699 = vmatpush1.msra.mxu0 0.0
    %700 = vmatprep.subr.mxu0 0.0
    %701 = vmatpush1.msra.mxu0 0.0
    %702 = vmatprep.subr.mxu0 0.0
    %703 = vmatpush1.msra.mxu0 0.0
    %704 = vmatprep.subr.mxu0 0.0
    %705 = vmatpush1.msra.mxu0 0.0
    %706 = vmatprep.subr.mxu0 0.0
    %707 = vmatpush1.msra.mxu0 0.0
    %708 = vmatprep.subr.mxu0 0.0
    %709 = vmatpush1.msra.mxu0 0.0
    %710 = vmatprep.subr.mxu0 0.0
    %711 = vmatpush1.msra.mxu0 0.0
    %712 = vmatprep.subr.mxu0 0.0
    %713 = vmatpush1.msra.mxu0 0.0
    %714 = vmatprep.subr.mxu0 0.0
    %715 = vmatpush1.msra.mxu0 0.0
    %716 = vmatprep.subr.mxu0 0.0
    %717 = vmatpush1.msra.mxu0 0.0
    %718 = vmatprep.subr.mxu0 0.0
    %719 = vmatpush1.msra.mxu0 0.0
    %720 = vmatprep.subr.mxu0 0.0
    %721 = vmatpush1.msra.mxu0 0.0
    %722 = vmatprep.subr.mxu0 0.0
    %723 = vmatpush1.msra.mxu0 0.0
    %724 = vmatprep.subr.mxu0 0.0
    %725 = vmatpush1.msra.mxu0 0.0
    %726 = vmatprep.subr.mxu0 0.0
    %727 = vmatpush1.msra.mxu0 0.0
    %728 = vmatprep.subr.mxu0 0.0
    %729 = vmatpush1.msra.mxu0 0.0
    %730 = vmatprep.subr.mxu0 0.0
    %731 = vmatpush1.msra.mxu0 0.0
    %732 = vmatprep.subr.mxu0 0.0
    %733 = vmatpush1.msra.mxu0 0.0
    %734 = vmatprep.subr.mxu0 0.0
    %735 = vmatpush1.msra.mxu0 0.0
    %736 = vmatprep.subr.mxu0 0.0
    %737 = vmatpush1.msra.mxu0 0.0
    %738 = vmatprep.subr.mxu0 0.0
    %739 = vmatpush1.msra.mxu0 0.0
    %740 = vmatprep.subr.mxu0 0.0
    %741 = vmatpush1.msra.mxu0 0.0
    %742 = vmatprep.subr.mxu0 0.0
    %743 = vmatpush1.msra.mxu0 0.0
    %744 = vmatprep.subr.mxu0 0.0
    %745 = vmatpush1.msra.mxu0 0.0
    %746 = vmatprep.subr.mxu0 0.0
    %747 = vmatpush1.msra.mxu0 0.0
    %748 = vmatprep.subr.mxu0 0.0
    %749 = vmatpush1.msra.mxu0 0.0
    %750 = vmatprep.subr.mxu0 0.0
    %751 = vmatpush1.msra.mxu0 0.0
    %752 = vmatprep.subr.mxu0 0.0
    %753 = vmatpush1.msra.mxu0 0.0
    %754 = vmatprep.subr.mxu0 0.0
    %755 = vmatpush1.msra.mxu0 0.0
    %756 = vmatprep.subr.mxu0 0.0
    %757 = vmatpush1.msra.mxu0 0.0
    %758 = vmatprep.mubr.f32.mxu0 0.0
    %759 = vmatmul.mubr.f32.gmra.mrb[0].mxu0 %v692
    %v760 = vpop.f32.mrb[0].mxu0
    %v761 = vadd.f32 0.0, %v760
    %v762 = vpop.f32.mrb[0].mxu0
    %763 = vdwg.mxu0
    %v764 = vld [vmem:[%s4] sm:$0xff]
    %v765 = vld [vmem:[%s4 + $0x8] sm:$0xff]
    %v766 = vld [vmem:[%s4 + $0x10] sm:$0xff]
    %v767 = vld [vmem:[%s4 + $0x18] sm:$0xff]
    %v768 = vld [vmem:[%s4 + $0x20] sm:$0x1]
    %v769 = vlaneseq
    %v770 = vshrl.u32 %v769, 7
    %v771 = vsub.s32 0, %v770
    %v772 = vrot.slane %v768, %v771
    %v774 = vsel %vm258, %v761, 0
    %776 = vmatprep.subr.mxu0 0.0
    %777 = vmatpush1.msra.mxu0 %v764
    %778 = vmatprep.subr.mxu0 0.0
    %779 = vmatpush1.msra.mxu0 %v765
    %780 = vmatprep.subr.mxu0 0.0
    %781 = vmatpush1.msra.mxu0 %v766
    %782 = vmatprep.subr.mxu0 0.0
    %783 = vmatpush1.msra.mxu0 %v767
    %784 = vmatprep.subr.mxu0 0.0
    %785 = vmatpush1.msra.mxu0 0.0
    %786 = vmatprep.subr.mxu0 0.0
    %787 = vmatpush1.msra.mxu0 0.0
    %788 = vmatprep.subr.mxu0 0.0
    %789 = vmatpush1.msra.mxu0 0.0
    %790 = vmatprep.subr.mxu0 0.0
    %791 = vmatpush1.msra.mxu0 0.0
    %792 = vmatprep.subr.mxu0 0.0
    %793 = vmatpush1.msra.mxu0 0.0
    %794 = vmatprep.subr.mxu0 0.0
    %795 = vmatpush1.msra.mxu0 0.0
    %796 = vmatprep.subr.mxu0 0.0
    %797 = vmatpush1.msra.mxu0 0.0
    %798 = vmatprep.subr.mxu0 0.0
    %799 = vmatpush1.msra.mxu0 0.0
    %800 = vmatprep.subr.mxu0 0.0
    %801 = vmatpush1.msra.mxu0 0.0
    %802 = vmatprep.subr.mxu0 0.0
    %803 = vmatpush1.msra.mxu0 0.0
    %804 = vmatprep.subr.mxu0 0.0
    %805 = vmatpush1.msra.mxu0 0.0
    %806 = vmatprep.subr.mxu0 0.0
    %807 = vmatpush1.msra.mxu0 0.0
    %808 = vmatprep.subr.mxu0 0.0
    %809 = vmatpush1.msra.mxu0 0.0
    %810 = vmatprep.subr.mxu0 0.0
    %811 = vmatpush1.msra.mxu0 0.0
    %812 = vmatprep.subr.mxu0 0.0
    %813 = vmatpush1.msra.mxu0 0.0
    %814 = vmatprep.subr.mxu0 0.0
    %815 = vmatpush1.msra.mxu0 0.0
    %816 = vmatprep.subr.mxu0 0.0
    %817 = vmatpush1.msra.mxu0 0.0
    %818 = vmatprep.subr.mxu0 0.0
    %819 = vmatpush1.msra.mxu0 0.0
    %820 = vmatprep.subr.mxu0 0.0
    %821 = vmatpush1.msra.mxu0 0.0
    %822 = vmatprep.subr.mxu0 0.0
    %823 = vmatpush1.msra.mxu0 0.0
    %824 = vmatprep.subr.mxu0 0.0
    %825 = vmatpush1.msra.mxu0 0.0
    %826 = vmatprep.subr.mxu0 0.0
    %827 = vmatpush1.msra.mxu0 0.0
    %828 = vmatprep.subr.mxu0 0.0
    %829 = vmatpush1.msra.mxu0 0.0
    %830 = vmatprep.subr.mxu0 0.0
    %831 = vmatpush1.msra.mxu0 0.0
    %832 = vmatprep.subr.mxu0 0.0
    %833 = vmatpush1.msra.mxu0 0.0
    %834 = vmatprep.subr.mxu0 0.0
    %835 = vmatpush1.msra.mxu0 0.0
    %836 = vmatprep.subr.mxu0 0.0
    %837 = vmatpush1.msra.mxu0 0.0
    %838 = vmatprep.subr.mxu0 0.0
    %839 = vmatpush1.msra.mxu0 0.0
    %840 = vmatprep.mubr.f32.mxu0 0.0
    %841 = vmatmul.mubr.f32.gmra.mrb[0].mxu0 %v774
    %v842 = vpop.f32.mrb[0].mxu0
    %v843 = vadd.f32 %v772, %v842
    %v844 = vpop.f32.mrb[0].mxu0
    %845 = vdwg.mxu0
    %vm846 = vcmask 25600
    %847 = vst.msk [vmem:[#allocation2] sm:$0x3] %vm846, %v843
    // Predicated region
    $region22: #{grcn2_forward.1} parent=1 // pred_check
      _
    $region23: #{grcn2_forward.1} parent=1 // pred_check_branch
      %849 = sbr.rel (0) target = $region25
    $region24: #{grcn2_forward.1} parent=1 // pred_region
      %s851 = ssub.s32 32, 32
      %852 = vsyncadd [#allocation3], %s851
      %s854 = sshll.u32 [#allocation2], 4
      %s855 = int_to_ptr.vmem [resolvable:$true] %s854
      %857 = dma.vmem_to_hbm [thread:$0]  %s855, 32, %s5, [#allocation3]
    $region25: #{grcn2_forward.1} parent=1 // pred_fallthru
      _
    // Predicated region
    $region26: #{grcn2_forward.1} parent=1 // pred_check
      _
    $region27: #{grcn2_forward.1} parent=1 // pred_check_branch
      %859 = sbr.rel (0) target = $region29
    $region28: #{grcn2_forward.1} parent=1 // pred_region
      %860 = dma.done [#allocation3], 32
    $region29: #{grcn2_forward.1} parent=1 // pred_fallthru
      _
    %861 = vsyncpa [#allocation3], 1

</llo_original>
